<compile_context>
chip_gen: v6e
topology: v6e:2x2x1
jax: 0.10.0
libtpu: 0.0.40
codegen_flags: <defaults>
</compile_context>

<pallas_src>
import jax
import jax.numpy as jnp
from jax.experimental import pallas as pl
from jax.experimental.pallas import tpu as pltpu


def _round_up(x, m):
    return ((x + m - 1) // m) * m


def _cdiv(a, b):
    return (a + b - 1) // b


def color_quantize_kernel(c_ref, x_ref, o_ref):
    """Nearest-center lookup on one dense channels-major pixel block.

    c_ref: SMEM (K*7,) f32  per center: [cr, cg, cb, -2cr, -2cg, -2cb, |c|^2]
    x_ref: VMEM (3, R, L) f32  channels-major pixel block (lane/sublane dense)
    o_ref: VMEM (3, R, L) f32  quantized output block
    """
    k = c_ref.shape[0] // 7

    # Dense (R, L) planes — full vregs, unmasked loads.
    xr = x_ref[0]
    xg = x_ref[1]
    xb = x_ref[2]

    def score(ki):
        base = 7 * ki
        cr = c_ref[base + 0]
        cg = c_ref[base + 1]
        cb = c_ref[base + 2]
        # ||x - c||^2 up to the common |x|^2 term:  x.(-2c) + |c|^2
        # (monotone-equivalent for the argmin; 6 VPU ops per center).
        s = (xr * c_ref[base + 3] + xg * c_ref[base + 4]
             + xb * c_ref[base + 5] + c_ref[base + 6])
        return s, cr, cg, cb

    # Online min/select over the K centers, fully unrolled (K static, small).
    # Strict '<' keeps the first (lowest-index) center on ties, matching
    # torch.min / argmin semantics.
    best_s, cr0, cg0, cb0 = score(0)
    best_r = jnp.full_like(best_s, cr0)
    best_g = jnp.full_like(best_s, cg0)
    best_b = jnp.full_like(best_s, cb0)
    for ki in range(1, k):
        s, cr, cg, cb = score(ki)
        m = s < best_s
        best_s = jnp.minimum(best_s, s)
        best_r = jnp.where(m, cr, best_r)
        best_g = jnp.where(m, cg, best_g)
        best_b = jnp.where(m, cb, best_b)

    # Dense, unmasked stores of full (R, L) planes.
    o_ref[0] = best_r
    o_ref[1] = best_g
    o_ref[2] = best_b


def color_quantize(x, centers, *, lane_tile=1024, row_tile=128):
    """Pallas wrapper. x: (N, 3) f32, centers: (K, 3) f32 -> (N, 3) f32."""
    n, ch = x.shape
    assert ch == 3 and centers.shape[1] == 3

    # --- Lane/sublane-dense layout planning --------------------------------
    # Lane width: multiple of 128, capped at lane_tile.
    lane = _round_up(min(lane_tile, _round_up(n, 128)), 128)
    rows_needed = _cdiv(n, lane)
    if rows_needed > row_tile:
        tile_r = row_tile                                  # multiple of 8
    elif rows_needed >= 16:
        # Split into (at least) 2 grid steps so v7x's two TensorCores both
        # get work; keep the block row count a multiple of 8.
        tile_r = _round_up(_cdiv(rows_needed, 2), 8)
    else:
        tile_r = rows_needed                               # full dim (legal)
    rows_total = _round_up(rows_needed, tile_r)
    n_pad = rows_total * lane

    # Single relayout pass: pad -> (rows, L, 3) -> channels-major (3, rows, L).
    x_f = x.astype(jnp.float32)
    if n_pad != n:
        x_f = jnp.pad(x_f, ((0, n_pad - n), (0, 0)))
    xt = jnp.transpose(x_f.reshape(rows_total, lane, 3), (2, 0, 1))

    # Centers as flat SMEM scalars (scalar prefetch):
    # per center k: [cr, cg, cb, -2cr, -2cg, -2cb, |c|^2].
    cf = centers.astype(jnp.float32)
    csq = jnp.sum(cf * cf, axis=1, keepdims=True)
    c_flat = jnp.concatenate([cf, -2.0 * cf, csq], axis=1).reshape(-1)

    out_t = pl.pallas_call(
        color_quantize_kernel,
        out_shape=jax.ShapeDtypeStruct((3, rows_total, lane), jnp.float32),
        grid_spec=pltpu.PrefetchScalarGridSpec(
            num_scalar_prefetch=1,
            grid=(rows_total // tile_r,),
            in_specs=[
                pl.BlockSpec((3, tile_r, lane), lambda i, c: (0, i, 0)),
            ],
            out_specs=pl.BlockSpec((3, tile_r, lane), lambda i, c: (0, i, 0)),
        ),
        compiler_params=pltpu.CompilerParams(
            dimension_semantics=("parallel",),
            # ~6 MiB live (1.5 MiB blocks x in/out x double-buffer); explicit
            # limit keeps the same tiling safe on v5e/v6e/v7x scoped VMEM.
            vmem_limit_bytes=32 * 1024 * 1024,
        ),
    )(c_flat, xt)

    # Back to (N, 3) to preserve module semantics (one relayout pass).
    out = jnp.transpose(out_t, (1, 2, 0)).reshape(n_pad, 3)
    return out[:n]


def color_quantize_ref(x, centers):
    """Pure-JAX reference mirroring the PyTorch forward."""
    dists = jnp.linalg.norm(x[:, None, :] - centers[None, :, :], axis=2)
    idx = jnp.argmin(dists, axis=1)
    return centers[idx]


if __name__ == "__main__":
    key = jax.random.PRNGKey(0)
    k_centers, k_x = jax.random.split(key)

    num_clusters = 8
    n_pixels = 1000  # small; not a multiple of 128 -> exercises padding path

    # Deterministic parameter init (matches nn.Parameter(torch.randn(K, 3))).
    cluster_centers = jax.random.normal(
        k_centers, (num_clusters, 3), dtype=jnp.float32)
    x = jax.random.normal(k_x, (n_pixels, 3), dtype=jnp.float32)

    out = color_quantize(x, cluster_centers)
    out = jax.block_until_ready(out)

    ref = color_quantize_ref(x, cluster_centers)
    assert out.shape == (n_pixels, 3)

    # Robust correctness checks (tolerant of rounding-order tie flips from the
    # -2x.c + |c|^2 score rewrite, while verifying nearest-center semantics):
    d_out = jnp.linalg.norm(x - out, axis=1)
    d_min = jnp.min(
        jnp.linalg.norm(x[:, None, :] - cluster_centers[None, :, :], axis=2),
        axis=1)
    assert jnp.allclose(d_out, d_min, atol=1e-5), "output is not the nearest center"
    exact = jnp.mean(jnp.all(jnp.abs(out - ref) < 1e-5, axis=1))
    assert exact >= 0.999, "too many pixels disagree with the reference"

    print("KERNEL_OK")
</pallas_src>

<mosaic_0001>
module attributes {stable_mosaic.version = 11 : i64} {
  func.func @color_quantize_kernel(%arg0: i32, %arg1: memref<56xf32, #tpu.memory_space<smem>>, %arg2: memref<3x1x1024xf32, #tpu.memory_space<vmem>>, %arg3: memref<3x1x1024xf32, #tpu.memory_space<vmem>>) attributes {dimension_semantics = [#tpu.dimension_semantics<parallel>], iteration_bounds = array<i64: 1>, scalar_prefetch = 1 : i64, scratch_operands = 0 : i64, tpu.core_type = #tpu.core_type<tc>, window_params = [{transform_indices = @transform_0, window_bounds = array<i64: 3, 1, 1024>}, {transform_indices = @transform_1, window_bounds = array<i64: 3, 1, 1024>}]} {
    %c0 = arith.constant 0 : index
    %c0_0 = arith.constant 0 : index
    %c0_1 = arith.constant 0 : index
    %0 = vector.load %arg2[%c0, %c0_0, %c0_1] : memref<3x1x1024xf32, #tpu.memory_space<vmem>>, vector<1x1x1024xf32>
    %1 = vector.shape_cast %0 : vector<1x1x1024xf32> to vector<1x1024xf32>
    %c1 = arith.constant 1 : index
    %c0_2 = arith.constant 0 : index
    %c0_3 = arith.constant 0 : index
    %2 = vector.load %arg2[%c1, %c0_2, %c0_3] : memref<3x1x1024xf32, #tpu.memory_space<vmem>>, vector<1x1x1024xf32>
    %3 = vector.shape_cast %2 : vector<1x1x1024xf32> to vector<1x1024xf32>
    %c2 = arith.constant 2 : index
    %c0_4 = arith.constant 0 : index
    %c0_5 = arith.constant 0 : index
    %4 = vector.load %arg2[%c2, %c0_4, %c0_5] : memref<3x1x1024xf32, #tpu.memory_space<vmem>>, vector<1x1x1024xf32>
    %5 = vector.shape_cast %4 : vector<1x1x1024xf32> to vector<1x1024xf32>
    %c0_6 = arith.constant 0 : index
    %6 = memref.load %arg1[%c0_6] : memref<56xf32, #tpu.memory_space<smem>>
    %c1_7 = arith.constant 1 : index
    %7 = memref.load %arg1[%c1_7] : memref<56xf32, #tpu.memory_space<smem>>
    %c2_8 = arith.constant 2 : index
    %8 = memref.load %arg1[%c2_8] : memref<56xf32, #tpu.memory_space<smem>>
    %c3 = arith.constant 3 : index
    %9 = memref.load %arg1[%c3] : memref<56xf32, #tpu.memory_space<smem>>
    %10 = vector.broadcast %9 : f32 to vector<1x1024xf32>
    %11 = arith.mulf %1, %10 : vector<1x1024xf32>
    %c4 = arith.constant 4 : index
    %12 = memref.load %arg1[%c4] : memref<56xf32, #tpu.memory_space<smem>>
    %13 = vector.broadcast %12 : f32 to vector<1x1024xf32>
    %14 = arith.mulf %3, %13 : vector<1x1024xf32>
    %15 = arith.addf %11, %14 : vector<1x1024xf32>
    %c5 = arith.constant 5 : index
    %16 = memref.load %arg1[%c5] : memref<56xf32, #tpu.memory_space<smem>>
    %17 = vector.broadcast %16 : f32 to vector<1x1024xf32>
    %18 = arith.mulf %5, %17 : vector<1x1024xf32>
    %19 = arith.addf %15, %18 : vector<1x1024xf32>
    %c6 = arith.constant 6 : index
    %20 = memref.load %arg1[%c6] : memref<56xf32, #tpu.memory_space<smem>>
    %21 = vector.broadcast %20 : f32 to vector<1x1024xf32>
    %22 = arith.addf %19, %21 : vector<1x1024xf32>
    %23 = vector.broadcast %6 : f32 to vector<1x1024xf32>
    %24 = vector.broadcast %7 : f32 to vector<1x1024xf32>
    %25 = vector.broadcast %8 : f32 to vector<1x1024xf32>
    %c7 = arith.constant 7 : index
    %26 = memref.load %arg1[%c7] : memref<56xf32, #tpu.memory_space<smem>>
    %c8 = arith.constant 8 : index
    %27 = memref.load %arg1[%c8] : memref<56xf32, #tpu.memory_space<smem>>
    %c9 = arith.constant 9 : index
    %28 = memref.load %arg1[%c9] : memref<56xf32, #tpu.memory_space<smem>>
    %c10 = arith.constant 10 : index
    %29 = memref.load %arg1[%c10] : memref<56xf32, #tpu.memory_space<smem>>
    %30 = vector.broadcast %29 : f32 to vector<1x1024xf32>
    %31 = arith.mulf %1, %30 : vector<1x1024xf32>
    %c11 = arith.constant 11 : index
    %32 = memref.load %arg1[%c11] : memref<56xf32, #tpu.memory_space<smem>>
    %33 = vector.broadcast %32 : f32 to vector<1x1024xf32>
    %34 = arith.mulf %3, %33 : vector<1x1024xf32>
    %35 = arith.addf %31, %34 : vector<1x1024xf32>
    %c12 = arith.constant 12 : index
    %36 = memref.load %arg1[%c12] : memref<56xf32, #tpu.memory_space<smem>>
    %37 = vector.broadcast %36 : f32 to vector<1x1024xf32>
    %38 = arith.mulf %5, %37 : vector<1x1024xf32>
    %39 = arith.addf %35, %38 : vector<1x1024xf32>
    %c13 = arith.constant 13 : index
    %40 = memref.load %arg1[%c13] : memref<56xf32, #tpu.memory_space<smem>>
    %41 = vector.broadcast %40 : f32 to vector<1x1024xf32>
    %42 = arith.addf %39, %41 : vector<1x1024xf32>
    %43 = arith.cmpf olt, %42, %22 : vector<1x1024xf32>
    %44 = arith.minimumf %22, %42 : vector<1x1024xf32>
    %45 = vector.broadcast %26 : f32 to vector<1x1024xf32>
    %46 = arith.select %43, %45, %23 : vector<1x1024xi1>, vector<1x1024xf32>
    %47 = vector.broadcast %27 : f32 to vector<1x1024xf32>
    %48 = arith.select %43, %47, %24 : vector<1x1024xi1>, vector<1x1024xf32>
    %49 = vector.broadcast %28 : f32 to vector<1x1024xf32>
    %50 = arith.select %43, %49, %25 : vector<1x1024xi1>, vector<1x1024xf32>
    %c14 = arith.constant 14 : index
    %51 = memref.load %arg1[%c14] : memref<56xf32, #tpu.memory_space<smem>>
    %c15 = arith.constant 15 : index
    %52 = memref.load %arg1[%c15] : memref<56xf32, #tpu.memory_space<smem>>
    %c16 = arith.constant 16 : index
    %53 = memref.load %arg1[%c16] : memref<56xf32, #tpu.memory_space<smem>>
    %c17 = arith.constant 17 : index
    %54 = memref.load %arg1[%c17] : memref<56xf32, #tpu.memory_space<smem>>
    %55 = vector.broadcast %54 : f32 to vector<1x1024xf32>
    %56 = arith.mulf %1, %55 : vector<1x1024xf32>
    %c18 = arith.constant 18 : index
    %57 = memref.load %arg1[%c18] : memref<56xf32, #tpu.memory_space<smem>>
    %58 = vector.broadcast %57 : f32 to vector<1x1024xf32>
    %59 = arith.mulf %3, %58 : vector<1x1024xf32>
    %60 = arith.addf %56, %59 : vector<1x1024xf32>
    %c19 = arith.constant 19 : index
    %61 = memref.load %arg1[%c19] : memref<56xf32, #tpu.memory_space<smem>>
    %62 = vector.broadcast %61 : f32 to vector<1x1024xf32>
    %63 = arith.mulf %5, %62 : vector<1x1024xf32>
    %64 = arith.addf %60, %63 : vector<1x1024xf32>
    %c20 = arith.constant 20 : index
    %65 = memref.load %arg1[%c20] : memref<56xf32, #tpu.memory_space<smem>>
    %66 = vector.broadcast %65 : f32 to vector<1x1024xf32>
    %67 = arith.addf %64, %66 : vector<1x1024xf32>
    %68 = arith.cmpf olt, %67, %44 : vector<1x1024xf32>
    %69 = arith.minimumf %44, %67 : vector<1x1024xf32>
    %70 = vector.broadcast %51 : f32 to vector<1x1024xf32>
    %71 = arith.select %68, %70, %46 : vector<1x1024xi1>, vector<1x1024xf32>
    %72 = vector.broadcast %52 : f32 to vector<1x1024xf32>
    %73 = arith.select %68, %72, %48 : vector<1x1024xi1>, vector<1x1024xf32>
    %74 = vector.broadcast %53 : f32 to vector<1x1024xf32>
    %75 = arith.select %68, %74, %50 : vector<1x1024xi1>, vector<1x1024xf32>
    %c21 = arith.constant 21 : index
    %76 = memref.load %arg1[%c21] : memref<56xf32, #tpu.memory_space<smem>>
    %c22 = arith.constant 22 : index
    %77 = memref.load %arg1[%c22] : memref<56xf32, #tpu.memory_space<smem>>
    %c23 = arith.constant 23 : index
    %78 = memref.load %arg1[%c23] : memref<56xf32, #tpu.memory_space<smem>>
    %c24 = arith.constant 24 : index
    %79 = memref.load %arg1[%c24] : memref<56xf32, #tpu.memory_space<smem>>
    %80 = vector.broadcast %79 : f32 to vector<1x1024xf32>
    %81 = arith.mulf %1, %80 : vector<1x1024xf32>
    %c25 = arith.constant 25 : index
    %82 = memref.load %arg1[%c25] : memref<56xf32, #tpu.memory_space<smem>>
    %83 = vector.broadcast %82 : f32 to vector<1x1024xf32>
    %84 = arith.mulf %3, %83 : vector<1x1024xf32>
    %85 = arith.addf %81, %84 : vector<1x1024xf32>
    %c26 = arith.constant 26 : index
    %86 = memref.load %arg1[%c26] : memref<56xf32, #tpu.memory_space<smem>>
    %87 = vector.broadcast %86 : f32 to vector<1x1024xf32>
    %88 = arith.mulf %5, %87 : vector<1x1024xf32>
    %89 = arith.addf %85, %88 : vector<1x1024xf32>
    %c27 = arith.constant 27 : index
    %90 = memref.load %arg1[%c27] : memref<56xf32, #tpu.memory_space<smem>>
    %91 = vector.broadcast %90 : f32 to vector<1x1024xf32>
    %92 = arith.addf %89, %91 : vector<1x1024xf32>
    %93 = arith.cmpf olt, %92, %69 : vector<1x1024xf32>
    %94 = arith.minimumf %69, %92 : vector<1x1024xf32>
    %95 = vector.broadcast %76 : f32 to vector<1x1024xf32>
    %96 = arith.select %93, %95, %71 : vector<1x1024xi1>, vector<1x1024xf32>
    %97 = vector.broadcast %77 : f32 to vector<1x1024xf32>
    %98 = arith.select %93, %97, %73 : vector<1x1024xi1>, vector<1x1024xf32>
    %99 = vector.broadcast %78 : f32 to vector<1x1024xf32>
    %100 = arith.select %93, %99, %75 : vector<1x1024xi1>, vector<1x1024xf32>
    %c28 = arith.constant 28 : index
    %101 = memref.load %arg1[%c28] : memref<56xf32, #tpu.memory_space<smem>>
    %c29 = arith.constant 29 : index
    %102 = memref.load %arg1[%c29] : memref<56xf32, #tpu.memory_space<smem>>
    %c30 = arith.constant 30 : index
    %103 = memref.load %arg1[%c30] : memref<56xf32, #tpu.memory_space<smem>>
    %c31 = arith.constant 31 : index
    %104 = memref.load %arg1[%c31] : memref<56xf32, #tpu.memory_space<smem>>
    %105 = vector.broadcast %104 : f32 to vector<1x1024xf32>
    %106 = arith.mulf %1, %105 : vector<1x1024xf32>
    %c32 = arith.constant 32 : index
    %107 = memref.load %arg1[%c32] : memref<56xf32, #tpu.memory_space<smem>>
    %108 = vector.broadcast %107 : f32 to vector<1x1024xf32>
    %109 = arith.mulf %3, %108 : vector<1x1024xf32>
    %110 = arith.addf %106, %109 : vector<1x1024xf32>
    %c33 = arith.constant 33 : index
    %111 = memref.load %arg1[%c33] : memref<56xf32, #tpu.memory_space<smem>>
    %112 = vector.broadcast %111 : f32 to vector<1x1024xf32>
    %113 = arith.mulf %5, %112 : vector<1x1024xf32>
    %114 = arith.addf %110, %113 : vector<1x1024xf32>
    %c34 = arith.constant 34 : index
    %115 = memref.load %arg1[%c34] : memref<56xf32, #tpu.memory_space<smem>>
    %116 = vector.broadcast %115 : f32 to vector<1x1024xf32>
    %117 = arith.addf %114, %116 : vector<1x1024xf32>
    %118 = arith.cmpf olt, %117, %94 : vector<1x1024xf32>
    %119 = arith.minimumf %94, %117 : vector<1x1024xf32>
    %120 = vector.broadcast %101 : f32 to vector<1x1024xf32>
    %121 = arith.select %118, %120, %96 : vector<1x1024xi1>, vector<1x1024xf32>
    %122 = vector.broadcast %102 : f32 to vector<1x1024xf32>
    %123 = arith.select %118, %122, %98 : vector<1x1024xi1>, vector<1x1024xf32>
    %124 = vector.broadcast %103 : f32 to vector<1x1024xf32>
    %125 = arith.select %118, %124, %100 : vector<1x1024xi1>, vector<1x1024xf32>
    %c35 = arith.constant 35 : index
    %126 = memref.load %arg1[%c35] : memref<56xf32, #tpu.memory_space<smem>>
    %c36 = arith.constant 36 : index
    %127 = memref.load %arg1[%c36] : memref<56xf32, #tpu.memory_space<smem>>
    %c37 = arith.constant 37 : index
    %128 = memref.load %arg1[%c37] : memref<56xf32, #tpu.memory_space<smem>>
    %c38 = arith.constant 38 : index
    %129 = memref.load %arg1[%c38] : memref<56xf32, #tpu.memory_space<smem>>
    %130 = vector.broadcast %129 : f32 to vector<1x1024xf32>
    %131 = arith.mulf %1, %130 : vector<1x1024xf32>
    %c39 = arith.constant 39 : index
    %132 = memref.load %arg1[%c39] : memref<56xf32, #tpu.memory_space<smem>>
    %133 = vector.broadcast %132 : f32 to vector<1x1024xf32>
    %134 = arith.mulf %3, %133 : vector<1x1024xf32>
    %135 = arith.addf %131, %134 : vector<1x1024xf32>
    %c40 = arith.constant 40 : index
    %136 = memref.load %arg1[%c40] : memref<56xf32, #tpu.memory_space<smem>>
    %137 = vector.broadcast %136 : f32 to vector<1x1024xf32>
    %138 = arith.mulf %5, %137 : vector<1x1024xf32>
    %139 = arith.addf %135, %138 : vector<1x1024xf32>
    %c41 = arith.constant 41 : index
    %140 = memref.load %arg1[%c41] : memref<56xf32, #tpu.memory_space<smem>>
    %141 = vector.broadcast %140 : f32 to vector<1x1024xf32>
    %142 = arith.addf %139, %141 : vector<1x1024xf32>
    %143 = arith.cmpf olt, %142, %119 : vector<1x1024xf32>
    %144 = arith.minimumf %119, %142 : vector<1x1024xf32>
    %145 = vector.broadcast %126 : f32 to vector<1x1024xf32>
    %146 = arith.select %143, %145, %121 : vector<1x1024xi1>, vector<1x1024xf32>
    %147 = vector.broadcast %127 : f32 to vector<1x1024xf32>
    %148 = arith.select %143, %147, %123 : vector<1x1024xi1>, vector<1x1024xf32>
    %149 = vector.broadcast %128 : f32 to vector<1x1024xf32>
    %150 = arith.select %143, %149, %125 : vector<1x1024xi1>, vector<1x1024xf32>
    %c42 = arith.constant 42 : index
    %151 = memref.load %arg1[%c42] : memref<56xf32, #tpu.memory_space<smem>>
    %c43 = arith.constant 43 : index
    %152 = memref.load %arg1[%c43] : memref<56xf32, #tpu.memory_space<smem>>
    %c44 = arith.constant 44 : index
    %153 = memref.load %arg1[%c44] : memref<56xf32, #tpu.memory_space<smem>>
    %c45 = arith.constant 45 : index
    %154 = memref.load %arg1[%c45] : memref<56xf32, #tpu.memory_space<smem>>
    %155 = vector.broadcast %154 : f32 to vector<1x1024xf32>
    %156 = arith.mulf %1, %155 : vector<1x1024xf32>
    %c46 = arith.constant 46 : index
    %157 = memref.load %arg1[%c46] : memref<56xf32, #tpu.memory_space<smem>>
    %158 = vector.broadcast %157 : f32 to vector<1x1024xf32>
    %159 = arith.mulf %3, %158 : vector<1x1024xf32>
    %160 = arith.addf %156, %159 : vector<1x1024xf32>
    %c47 = arith.constant 47 : index
    %161 = memref.load %arg1[%c47] : memref<56xf32, #tpu.memory_space<smem>>
    %162 = vector.broadcast %161 : f32 to vector<1x1024xf32>
    %163 = arith.mulf %5, %162 : vector<1x1024xf32>
    %164 = arith.addf %160, %163 : vector<1x1024xf32>
    %c48 = arith.constant 48 : index
    %165 = memref.load %arg1[%c48] : memref<56xf32, #tpu.memory_space<smem>>
    %166 = vector.broadcast %165 : f32 to vector<1x1024xf32>
    %167 = arith.addf %164, %166 : vector<1x1024xf32>
    %168 = arith.cmpf olt, %167, %144 : vector<1x1024xf32>
    %169 = arith.minimumf %144, %167 : vector<1x1024xf32>
    %170 = vector.broadcast %151 : f32 to vector<1x1024xf32>
    %171 = arith.select %168, %170, %146 : vector<1x1024xi1>, vector<1x1024xf32>
    %172 = vector.broadcast %152 : f32 to vector<1x1024xf32>
    %173 = arith.select %168, %172, %148 : vector<1x1024xi1>, vector<1x1024xf32>
    %174 = vector.broadcast %153 : f32 to vector<1x1024xf32>
    %175 = arith.select %168, %174, %150 : vector<1x1024xi1>, vector<1x1024xf32>
    %c49 = arith.constant 49 : index
    %176 = memref.load %arg1[%c49] : memref<56xf32, #tpu.memory_space<smem>>
    %c50 = arith.constant 50 : index
    %177 = memref.load %arg1[%c50] : memref<56xf32, #tpu.memory_space<smem>>
    %c51 = arith.constant 51 : index
    %178 = memref.load %arg1[%c51] : memref<56xf32, #tpu.memory_space<smem>>
    %c52 = arith.constant 52 : index
    %179 = memref.load %arg1[%c52] : memref<56xf32, #tpu.memory_space<smem>>
    %180 = vector.broadcast %179 : f32 to vector<1x1024xf32>
    %181 = arith.mulf %1, %180 : vector<1x1024xf32>
    %c53 = arith.constant 53 : index
    %182 = memref.load %arg1[%c53] : memref<56xf32, #tpu.memory_space<smem>>
    %183 = vector.broadcast %182 : f32 to vector<1x1024xf32>
    %184 = arith.mulf %3, %183 : vector<1x1024xf32>
    %185 = arith.addf %181, %184 : vector<1x1024xf32>
    %c54 = arith.constant 54 : index
    %186 = memref.load %arg1[%c54] : memref<56xf32, #tpu.memory_space<smem>>
    %187 = vector.broadcast %186 : f32 to vector<1x1024xf32>
    %188 = arith.mulf %5, %187 : vector<1x1024xf32>
    %189 = arith.addf %185, %188 : vector<1x1024xf32>
    %c55 = arith.constant 55 : index
    %190 = memref.load %arg1[%c55] : memref<56xf32, #tpu.memory_space<smem>>
    %191 = vector.broadcast %190 : f32 to vector<1x1024xf32>
    %192 = arith.addf %189, %191 : vector<1x1024xf32>
    %193 = arith.cmpf olt, %192, %169 : vector<1x1024xf32>
    %194 = vector.broadcast %176 : f32 to vector<1x1024xf32>
    %195 = arith.select %193, %194, %171 : vector<1x1024xi1>, vector<1x1024xf32>
    %196 = vector.broadcast %177 : f32 to vector<1x1024xf32>
    %197 = arith.select %193, %196, %173 : vector<1x1024xi1>, vector<1x1024xf32>
    %198 = vector.broadcast %178 : f32 to vector<1x1024xf32>
    %199 = arith.select %193, %198, %175 : vector<1x1024xi1>, vector<1x1024xf32>
    %c0_9 = arith.constant 0 : index
    %c0_10 = arith.constant 0 : index
    %c0_11 = arith.constant 0 : index
    %200 = vector.load %arg3[%c0_9, %c0_10, %c0_11] : memref<3x1x1024xf32, #tpu.memory_space<vmem>>, vector<1x1x1024xf32>
    %201 = vector.shape_cast %200 : vector<1x1x1024xf32> to vector<1x1024xf32>
    %202 = vector.shape_cast %195 : vector<1x1024xf32> to vector<1x1x1024xf32>
    tpu.vector_store %arg3[%c0_9, %c0_10, %c0_11], %202 {strides = array<i32>} : memref<3x1x1024xf32, #tpu.memory_space<vmem>>, vector<1x1x1024xf32>,
    %c1_12 = arith.constant 1 : index
    %c0_13 = arith.constant 0 : index
    %c0_14 = arith.constant 0 : index
    %203 = vector.load %arg3[%c1_12, %c0_13, %c0_14] : memref<3x1x1024xf32, #tpu.memory_space<vmem>>, vector<1x1x1024xf32>
    %204 = vector.shape_cast %203 : vector<1x1x1024xf32> to vector<1x1024xf32>
    %205 = vector.shape_cast %197 : vector<1x1024xf32> to vector<1x1x1024xf32>
    tpu.vector_store %arg3[%c1_12, %c0_13, %c0_14], %205 {strides = array<i32>} : memref<3x1x1024xf32, #tpu.memory_space<vmem>>, vector<1x1x1024xf32>,
    %c2_15 = arith.constant 2 : index
    %c0_16 = arith.constant 0 : index
    %c0_17 = arith.constant 0 : index
    %206 = vector.load %arg3[%c2_15, %c0_16, %c0_17] : memref<3x1x1024xf32, #tpu.memory_space<vmem>>, vector<1x1x1024xf32>
    %207 = vector.shape_cast %206 : vector<1x1x1024xf32> to vector<1x1024xf32>
    %208 = vector.shape_cast %199 : vector<1x1024xf32> to vector<1x1x1024xf32>
    tpu.vector_store %arg3[%c2_15, %c0_16, %c0_17], %208 {strides = array<i32>} : memref<3x1x1024xf32, #tpu.memory_space<vmem>>, vector<1x1x1024xf32>,
    return
  }
  func.func @transform_0(%arg0: i32, %arg1: memref<56xf32, #tpu.memory_space<smem>>) -> (i32, i32, i32) {
    %c0_i32 = arith.constant 0 : i32
    %c0_i32_0 = arith.constant 0 : i32
    %c0_i32_1 = arith.constant 0 : i32
    return %c0_i32, %arg0, %c0_i32_0 : i32, i32, i32
  }
  func.func @transform_1(%arg0: i32, %arg1: memref<56xf32, #tpu.memory_space<smem>>) -> (i32, i32, i32) {
    %c0_i32 = arith.constant 0 : i32
    %c0_i32_0 = arith.constant 0 : i32
    %c0_i32_1 = arith.constant 0 : i32
    return %c0_i32, %arg0, %c0_i32_0 : i32, i32, i32
  }
}

</mosaic_0001>

<llo_original>
// kernel: tpu_custom_call.1
$region0: #{tpu_custom_call.1}
  #allocation0 [shape = 'u32[]', space=smem, size = 0x4, offset = 0x4, fixed_abs, tag = 'smem constant byte address 0x4 - core index']
  #allocation1 [shape = 'u32[144,128]{1,0:T(1,128)}', space=vmem, size = 0x12000, scoped, tag = 'internal scratch']
  #allocation2 [shape = 's32[1]{0}', space=sflag, size = 0x4, scoped, tag = 'scoped memory for tpu_custom_call.1']
  #allocation3 [shape = 'u8[512]{0}', space=smem, size = 0x200, scoped, tag = 'prefetched SMEM operand 0']
  %s0 = inlined_call_operand.hbm [shape: f32[56], index: 0, kind: input, shape index: {}]
  %s1 = inlined_call_operand.hbm [shape: f32[3,1,1024], index: 1, kind: input, shape index: {}]
  %s2 = inlined_call_operand.hbm [shape: f32[3,1,1024], index: 2, kind: output, shape index: {}]
  %s3 = sld [smem:[#allocation0]]
  $region18: #{tpu_custom_call.1} parent=0
    _
  %s5 = ssub.s32 1, %s3
  %s6 = scalar_select 0, %s5, %s3
  %8 = dma.hbm_to_smem %s0, 16, [#allocation3], [#allocation2]
  %9 = dma.done [#allocation2], 16
  %10 = sfence
  $region1: #{tpu_custom_call.1} parent=0
    #allocation4 [shape = 'u8[12288]{0}', space=vmem, size = 0x3000, scoped, tag = 'input window, operand 1, single buffered']
    #allocation5 [shape = 's32[1]{0}', space=sflag, size = 0x4, scoped, tag = 'scoped memory for tpu_custom_call.1']
    #allocation6 [shape = 's32[1]{0}', space=sflag, size = 0x4, scoped, tag = 'scoped memory for tpu_custom_call.1']
    #allocation7 [shape = 'u8[12288]{0}', space=vmem, size = 0x3000, scoped, tag = 'output window, operand 0, single buffered']
    %11 = vsyncpa [#allocation5], 0
    %12 = vsyncpa [#allocation6], 0
    // Predicated region
    $region2: #{tpu_custom_call.1} parent=1 // pred_check
      _
    $region3: #{tpu_custom_call.1} parent=1 // pred_check_branch
      %14 = sbr.rel (0) target = $region5
    $region4: #{tpu_custom_call.1} parent=1 // pred_region
      %s16 = ssub.s32 384, 384
      %17 = vsyncadd [#allocation5], %s16
      %s18 = sshll.u32 [#allocation4], 4
      %s19 = int_to_ptr.vmem [resolvable:$true] %s18
      %24 = dma.hbm_to_vmem [thread:$0]  %s1, 384, %s19, [#allocation5], 128, 128, 8
    $region5: #{tpu_custom_call.1} parent=1 // pred_fallthru
      _
    // Predicated region
    $region6: #{tpu_custom_call.1} parent=1 // pred_check
      _
    $region7: #{tpu_custom_call.1} parent=1 // pred_check_branch
      %26 = sbr.rel (0) target = $region9
    $region8: #{tpu_custom_call.1} parent=1 // pred_region
      %27 = dma.done [#allocation5], 384
    $region9: #{tpu_custom_call.1} parent=1 // pred_fallthru
      _
    %v28 = vld [vmem:[#allocation4] sm:$0xff]
    %s29 = scalar_lea.vmem [#allocation4], 8
    %v30 = vld [vmem:[%s29] sm:$0xff]
    %s31 = scalar_lea.vmem [#allocation4], 16
    %v32 = vld [vmem:[%s31] sm:$0xff]
    %s33 = sld [smem:[#allocation3]]
    %s34 = sld [smem:[#allocation3 + $0x1]]
    %s35 = sld [smem:[#allocation3 + $0x2]]
    %s36 = sld [smem:[#allocation3 + $0x3]]
    %v37 = vstv %s36
    %v38 = vmul.f32 %v28, %v37
    %s39 = sld [smem:[#allocation3 + $0x4]]
    %v40 = vstv %s39
    %v41 = vmul.f32 %v30, %v40
    %v42 = vadd.f32 %v38, %v41
    %s43 = sld [smem:[#allocation3 + $0x5]]
    %v44 = vstv %s43
    %v45 = vmul.f32 %v32, %v44
    %v46 = vadd.f32 %v42, %v45
    %s47 = sld [smem:[#allocation3 + $0x6]]
    %v48 = vstv %s47
    %v49 = vadd.f32 %v46, %v48
    %v50 = vstv %s33
    %v51 = vstv %s34
    %v52 = vstv %s35
    %s53 = sld [smem:[#allocation3 + $0x7]]
    %s54 = sld [smem:[#allocation3 + $0x8]]
    %s55 = sld [smem:[#allocation3 + $0x9]]
    %s56 = sld [smem:[#allocation3 + $0xa]]
    %v57 = vstv %s56
    %v58 = vmul.f32 %v28, %v57
    %s59 = sld [smem:[#allocation3 + $0xb]]
    %v60 = vstv %s59
    %v61 = vmul.f32 %v30, %v60
    %v62 = vadd.f32 %v58, %v61
    %s63 = sld [smem:[#allocation3 + $0xc]]
    %v64 = vstv %s63
    %v65 = vmul.f32 %v32, %v64
    %v66 = vadd.f32 %v62, %v65
    %s67 = sld [smem:[#allocation3 + $0xd]]
    %v68 = vstv %s67
    %v69 = vadd.f32 %v66, %v68
    %vm70 = vcmp.lt.f32.partialorder %v69, %v49
    %v71 = vmin.f32 %v49, %v69
    %v72 = vstv %s53
    %v73 = vsel %vm70, %v72, %v50
    %v74 = vstv %s54
    %v75 = vsel %vm70, %v74, %v51
    %v76 = vstv %s55
    %v77 = vsel %vm70, %v76, %v52
    %s78 = sld [smem:[#allocation3 + $0xe]]
    %s79 = sld [smem:[#allocation3 + $0xf]]
    %s80 = sld [smem:[#allocation3 + $0x10]]
    %s81 = sld [smem:[#allocation3 + $0x11]]
    %v82 = vstv %s81
    %v83 = vmul.f32 %v28, %v82
    %s84 = sld [smem:[#allocation3 + $0x12]]
    %v85 = vstv %s84
    %v86 = vmul.f32 %v30, %v85
    %v87 = vadd.f32 %v83, %v86
    %s88 = sld [smem:[#allocation3 + $0x13]]
    %v89 = vstv %s88
    %v90 = vmul.f32 %v32, %v89
    %v91 = vadd.f32 %v87, %v90
    %s92 = sld [smem:[#allocation3 + $0x14]]
    %v93 = vstv %s92
    %v94 = vadd.f32 %v91, %v93
    %vm95 = vcmp.lt.f32.partialorder %v94, %v71
    %v96 = vmin.f32 %v71, %v94
    %v97 = vstv %s78
    %v98 = vsel %vm95, %v97, %v73
    %v99 = vstv %s79
    %v100 = vsel %vm95, %v99, %v75
    %v101 = vstv %s80
    %v102 = vsel %vm95, %v101, %v77
    %s103 = sld [smem:[#allocation3 + $0x15]]
    %s104 = sld [smem:[#allocation3 + $0x16]]
    %s105 = sld [smem:[#allocation3 + $0x17]]
    %s106 = sld [smem:[#allocation3 + $0x18]]
    %v107 = vstv %s106
    %v108 = vmul.f32 %v28, %v107
    %s109 = sld [smem:[#allocation3 + $0x19]]
    %v110 = vstv %s109
    %v111 = vmul.f32 %v30, %v110
    %v112 = vadd.f32 %v108, %v111
    %s113 = sld [smem:[#allocation3 + $0x1a]]
    %v114 = vstv %s113
    %v115 = vmul.f32 %v32, %v114
    %v116 = vadd.f32 %v112, %v115
    %s117 = sld [smem:[#allocation3 + $0x1b]]
    %v118 = vstv %s117
    %v119 = vadd.f32 %v116, %v118
    %vm120 = vcmp.lt.f32.partialorder %v119, %v96
    %v121 = vmin.f32 %v96, %v119
    %v122 = vstv %s103
    %v123 = vsel %vm120, %v122, %v98
    %v124 = vstv %s104
    %v125 = vsel %vm120, %v124, %v100
    %v126 = vstv %s105
    %v127 = vsel %vm120, %v126, %v102
    %s128 = sld [smem:[#allocation3 + $0x1c]]
    %s129 = sld [smem:[#allocation3 + $0x1d]]
    %s130 = sld [smem:[#allocation3 + $0x1e]]
    %s131 = sld [smem:[#allocation3 + $0x1f]]
    %v132 = vstv %s131
    %v133 = vmul.f32 %v28, %v132
    %s134 = sld [smem:[#allocation3 + $0x20]]
    %v135 = vstv %s134
    %v136 = vmul.f32 %v30, %v135
    %v137 = vadd.f32 %v133, %v136
    %s138 = sld [smem:[#allocation3 + $0x21]]
    %v139 = vstv %s138
    %v140 = vmul.f32 %v32, %v139
    %v141 = vadd.f32 %v137, %v140
    %s142 = sld [smem:[#allocation3 + $0x22]]
    %v143 = vstv %s142
    %v144 = vadd.f32 %v141, %v143
    %vm145 = vcmp.lt.f32.partialorder %v144, %v121
    %v146 = vmin.f32 %v121, %v144
    %v147 = vstv %s128
    %v148 = vsel %vm145, %v147, %v123
    %v149 = vstv %s129
    %v150 = vsel %vm145, %v149, %v125
    %v151 = vstv %s130
    %v152 = vsel %vm145, %v151, %v127
    %s153 = sld [smem:[#allocation3 + $0x23]]
    %s154 = sld [smem:[#allocation3 + $0x24]]
    %s155 = sld [smem:[#allocation3 + $0x25]]
    %s156 = sld [smem:[#allocation3 + $0x26]]
    %v157 = vstv %s156
    %v158 = vmul.f32 %v28, %v157
    %s159 = sld [smem:[#allocation3 + $0x27]]
    %v160 = vstv %s159
    %v161 = vmul.f32 %v30, %v160
    %v162 = vadd.f32 %v158, %v161
    %s163 = sld [smem:[#allocation3 + $0x28]]
    %v164 = vstv %s163
    %v165 = vmul.f32 %v32, %v164
    %v166 = vadd.f32 %v162, %v165
    %s167 = sld [smem:[#allocation3 + $0x29]]
    %v168 = vstv %s167
    %v169 = vadd.f32 %v166, %v168
    %vm170 = vcmp.lt.f32.partialorder %v169, %v146
    %v171 = vmin.f32 %v146, %v169
    %v172 = vstv %s153
    %v173 = vsel %vm170, %v172, %v148
    %v174 = vstv %s154
    %v175 = vsel %vm170, %v174, %v150
    %v176 = vstv %s155
    %v177 = vsel %vm170, %v176, %v152
    %s178 = sld [smem:[#allocation3 + $0x2a]]
    %s179 = sld [smem:[#allocation3 + $0x2b]]
    %s180 = sld [smem:[#allocation3 + $0x2c]]
    %s181 = sld [smem:[#allocation3 + $0x2d]]
    %v182 = vstv %s181
    %v183 = vmul.f32 %v28, %v182
    %s184 = sld [smem:[#allocation3 + $0x2e]]
    %v185 = vstv %s184
    %v186 = vmul.f32 %v30, %v185
    %v187 = vadd.f32 %v183, %v186
    %s188 = sld [smem:[#allocation3 + $0x2f]]
    %v189 = vstv %s188
    %v190 = vmul.f32 %v32, %v189
    %v191 = vadd.f32 %v187, %v190
    %s192 = sld [smem:[#allocation3 + $0x30]]
    %v193 = vstv %s192
    %v194 = vadd.f32 %v191, %v193
    %vm195 = vcmp.lt.f32.partialorder %v194, %v171
    %v196 = vmin.f32 %v171, %v194
    %v197 = vstv %s178
    %v198 = vsel %vm195, %v197, %v173
    %v199 = vstv %s179
    %v200 = vsel %vm195, %v199, %v175
    %v201 = vstv %s180
    %v202 = vsel %vm195, %v201, %v177
    %s203 = sld [smem:[#allocation3 + $0x31]]
    %s204 = sld [smem:[#allocation3 + $0x32]]
    %s205 = sld [smem:[#allocation3 + $0x33]]
    %s206 = sld [smem:[#allocation3 + $0x34]]
    %v207 = vstv %s206
    %v208 = vmul.f32 %v28, %v207
    %s209 = sld [smem:[#allocation3 + $0x35]]
    %v210 = vstv %s209
    %v211 = vmul.f32 %v30, %v210
    %v212 = vadd.f32 %v208, %v211
    %s213 = sld [smem:[#allocation3 + $0x36]]
    %v214 = vstv %s213
    %v215 = vmul.f32 %v32, %v214
    %v216 = vadd.f32 %v212, %v215
    %s217 = sld [smem:[#allocation3 + $0x37]]
    %v218 = vstv %s217
    %v219 = vadd.f32 %v216, %v218
    %vm220 = vcmp.lt.f32.partialorder %v219, %v196
    %v221 = vstv %s203
    %v222 = vsel %vm220, %v221, %v198
    %v223 = vstv %s204
    %v224 = vsel %vm220, %v223, %v200
    %v225 = vstv %s205
    %v226 = vsel %vm220, %v225, %v202
    %227 = vst [vmem:[#allocation7] sm:$0xff] %v222
    %s228 = scalar_lea.vmem [#allocation7], 8
    %229 = vst [vmem:[%s228] sm:$0xff] %v224
    %s230 = scalar_lea.vmem [#allocation7], 16
    %231 = vst [vmem:[%s230] sm:$0xff] %v226
    // Predicated region
    $region10: #{tpu_custom_call.1} parent=1 // pred_check
      _
    $region11: #{tpu_custom_call.1} parent=1 // pred_check_branch
      %233 = sbr.rel (0) target = $region13
    $region12: #{tpu_custom_call.1} parent=1 // pred_region
      %s235 = ssub.s32 384, 384
      %236 = vsyncadd [#allocation6], %s235
      %s237 = sshll.u32 [#allocation7], 4
      %s238 = int_to_ptr.vmem [resolvable:$true] %s237
      %243 = dma.vmem_to_hbm [thread:$0]  %s238, 384, %s2, [#allocation6], 128, 128, 8
    $region13: #{tpu_custom_call.1} parent=1 // pred_fallthru
      _
    // Predicated region
    $region14: #{tpu_custom_call.1} parent=1 // pred_check
      _
    $region15: #{tpu_custom_call.1} parent=1 // pred_check_branch
      %245 = sbr.rel (0) target = $region17
    $region16: #{tpu_custom_call.1} parent=1 // pred_region
      %246 = dma.done [#allocation6], 384
    $region17: #{tpu_custom_call.1} parent=1 // pred_fallthru
      _
    %247 = vsyncpa [#allocation5], 1
    %248 = vsyncpa [#allocation6], 1

</llo_original>
